<compile_context>
chip_gen: v6e
topology: v6e:2x2x1
jax: 0.10.0
libtpu: 0.0.40
codegen_flags: <defaults>
</compile_context>

<pallas_src>
import functools

import jax
import jax.numpy as jnp
from jax.experimental import pallas as pl
from jax.experimental.pallas import tpu as pltpu

LANE = 128  # one vreg lane-width; all feature dims padded to this


def _mlp_kernel(x_ref, w1_ref, b1_ref, w2_ref, b2_ref, w3_ref, b3_ref,
                w4_ref, b4_ref, o_ref):
    x = x_ref[...]                                              # (TILE_B, 128)

    # fc1 + ReLU
    h1 = jnp.dot(x, w1_ref[...], preferred_element_type=jnp.float32)
    h1 = jnp.maximum(h1 + b1_ref[...], 0.0)

    # fc2 + ReLU
    h2 = jnp.dot(h1, w2_ref[...], preferred_element_type=jnp.float32)
    h2 = jnp.maximum(h2 + b2_ref[...], 0.0)

    # fc3 + ReLU
    h3 = jnp.dot(h2, w3_ref[...], preferred_element_type=jnp.float32)
    h3 = jnp.maximum(h3 + b3_ref[...], 0.0)

    # fc4 + Sigmoid (tanh form: single EUP op, no divide, overflow-safe)
    logits = jnp.dot(h3, w4_ref[...], preferred_element_type=jnp.float32)
    logits = logits + b4_ref[...]
    o_ref[...] = 0.5 * (jnp.tanh(0.5 * logits) + 1.0)


def _round_up(x, m):
    return ((x + m - 1) // m) * m


def _pad2d(a, rows, cols):
    return jnp.pad(a, ((0, rows - a.shape[0]), (0, cols - a.shape[1])))


def label_predictor_forward(x, params, *, tile_b=512):
    """x: (B, 100) float32; params: w1..w4 stored (in, out) == W.T, b1..b4 (1, out)."""
    B = x.shape[0]
    num_classes = params["w4"].shape[1]

    # Batch tile: 512 rows (~256 KB/tile f32) streams well on v5e/v6e/v7x and
    # keeps double-buffered VMEM use far below the 16/32 MiB scoped defaults.
    tile_b = min(tile_b, _round_up(B, 8))
    b_pad = _round_up(B, tile_b)

    # Host-side zero padding: K=100 -> 128 and every out-feature dim -> 128.
    xp = _pad2d(x, b_pad, LANE)
    wp = [_pad2d(params[f"w{i}"], LANE, LANE) for i in range(1, 5)]
    bp = [_pad2d(params[f"b{i}"], 1, LANE) for i in range(1, 5)]

    grid = (b_pad // tile_b,)
    x_spec = pl.BlockSpec((tile_b, LANE), lambda i: (i, 0))
    w_spec = pl.BlockSpec((LANE, LANE), lambda i: (0, 0))   # resident weights
    b_spec = pl.BlockSpec((1, LANE), lambda i: (0, 0))      # resident biases
    o_spec = pl.BlockSpec((tile_b, LANE), lambda i: (i, 0))

    out = pl.pallas_call(
        _mlp_kernel,
        out_shape=jax.ShapeDtypeStruct((b_pad, LANE), jnp.float32),
        grid=grid,
        in_specs=[x_spec,
                  w_spec, b_spec,
                  w_spec, b_spec,
                  w_spec, b_spec,
                  w_spec, b_spec],
        out_specs=o_spec,
        compiler_params=pltpu.CompilerParams(
            dimension_semantics=("parallel",)),   # megacore-shard the batch
    )(xp, wp[0], bp[0], wp[1], bp[1], wp[2], bp[2], wp[3], bp[3])

    return out[:B, :num_classes]


def _xavier_uniform(key, fan_in, fan_out, gain):
    # matches torch.nn.init.xavier_uniform_ bound; stored as (in, out) == W.T
    bound = gain * (6.0 / (fan_in + fan_out)) ** 0.5
    return jax.random.uniform(key, (fan_in, fan_out), jnp.float32, -bound, bound)


def _linear_bias(key, fan_in, fan_out):
    # PyTorch nn.Linear default bias init: U(-1/sqrt(fan_in), 1/sqrt(fan_in))
    bound = 1.0 / (fan_in ** 0.5)
    return jax.random.uniform(key, (1, fan_out), jnp.float32, -bound, bound)


def make_params(key, num_classes):
    gain = 5.0 / 3.0  # nn.init.calculate_gain('tanh')
    dims = [(100, 70), (70, 50), (50, 20), (20, num_classes)]
    params = {}
    keys = jax.random.split(key, 2 * len(dims))
    for i, (fi, fo) in enumerate(dims):
        params[f"w{i + 1}"] = _xavier_uniform(keys[2 * i], fi, fo, gain)
        params[f"b{i + 1}"] = _linear_bias(keys[2 * i + 1], fi, fo)
    return params


def reference_forward(x, params):
    h = x
    for i in range(1, 4):
        h = jnp.maximum(h @ params[f"w{i}"] + params[f"b{i}"], 0.0)
    logits = h @ params["w4"] + params["b4"]
    return jax.nn.sigmoid(logits)


if __name__ == "__main__":
    key = jax.random.PRNGKey(0)
    k_param, k_x = jax.random.split(key)

    num_classes = 10
    batch = 8
    params = make_params(k_param, num_classes)
    x = jax.random.normal(k_x, (batch, 100), jnp.float32)

    fwd = jax.jit(functools.partial(label_predictor_forward))
    out = jax.block_until_ready(fwd(x, params))

    ref = reference_forward(x, params)
    assert out.shape == (batch, num_classes)
    assert jnp.allclose(out, ref, atol=1e-5, rtol=1e-5)

    print("KERNEL_OK")
</pallas_src>

<mosaic_0001>
module attributes {stable_mosaic.version = 11 : i64} {
  func.func @_mlp_kernel(%arg0: i32, %arg1: memref<8x128xf32, #tpu.memory_space<vmem>>, %arg2: memref<128x128xf32, #tpu.memory_space<vmem>>, %arg3: memref<1x128xf32, #tpu.memory_space<vmem>>, %arg4: memref<128x128xf32, #tpu.memory_space<vmem>>, %arg5: memref<1x128xf32, #tpu.memory_space<vmem>>, %arg6: memref<128x128xf32, #tpu.memory_space<vmem>>, %arg7: memref<1x128xf32, #tpu.memory_space<vmem>>, %arg8: memref<128x128xf32, #tpu.memory_space<vmem>>, %arg9: memref<1x128xf32, #tpu.memory_space<vmem>>, %arg10: memref<8x128xf32, #tpu.memory_space<vmem>>) attributes {dimension_semantics = [#tpu.dimension_semantics<parallel>], iteration_bounds = array<i64: 1>, scalar_prefetch = 0 : i64, scratch_operands = 0 : i64, tpu.core_type = #tpu.core_type<tc>, window_params = [{transform_indices = @transform_0, window_bounds = array<i64: 8, 128>}, {pipeline_mode = #tpu.pipeline_mode<synchronous>, transform_indices = @transform_1, window_bounds = array<i64: 128, 128>}, {pipeline_mode = #tpu.pipeline_mode<synchronous>, transform_indices = @transform_2, window_bounds = array<i64: 1, 128>}, {pipeline_mode = #tpu.pipeline_mode<synchronous>, transform_indices = @transform_3, window_bounds = array<i64: 128, 128>}, {pipeline_mode = #tpu.pipeline_mode<synchronous>, transform_indices = @transform_4, window_bounds = array<i64: 1, 128>}, {pipeline_mode = #tpu.pipeline_mode<synchronous>, transform_indices = @transform_5, window_bounds = array<i64: 128, 128>}, {pipeline_mode = #tpu.pipeline_mode<synchronous>, transform_indices = @transform_6, window_bounds = array<i64: 1, 128>}, {pipeline_mode = #tpu.pipeline_mode<synchronous>, transform_indices = @transform_7, window_bounds = array<i64: 128, 128>}, {pipeline_mode = #tpu.pipeline_mode<synchronous>, transform_indices = @transform_8, window_bounds = array<i64: 1, 128>}, {transform_indices = @transform_9, window_bounds = array<i64: 8, 128>}]} {
    %c0 = arith.constant 0 : index
    %c0_0 = arith.constant 0 : index
    %0 = vector.load %arg1[%c0, %c0_0] : memref<8x128xf32, #tpu.memory_space<vmem>>, vector<8x128xf32>
    %c0_1 = arith.constant 0 : index
    %c0_2 = arith.constant 0 : index
    %1 = vector.load %arg2[%c0_1, %c0_2] : memref<128x128xf32, #tpu.memory_space<vmem>>, vector<128x128xf32>
    %cst = arith.constant dense<0.000000e+00> : vector<8x128xf32>
    %2 = tpu.matmul %0, %1, %cst {dimension_numbers = #tpu.dot_dimension_numbers<[1], [0], [0], [1], [0, 0, 1, 1], [], []>} : vector<8x128xf32>, vector<128x128xf32>, vector<8x128xf32> -> vector<8x128xf32>
    %c0_3 = arith.constant 0 : index
    %c0_4 = arith.constant 0 : index
    %3 = vector.load %arg3[%c0_3, %c0_4] : memref<1x128xf32, #tpu.memory_space<vmem>>, vector<1x128xf32>
    %4 = vector.broadcast %3 : vector<1x128xf32> to vector<8x128xf32>
    %5 = arith.addf %2, %4 : vector<8x128xf32>
    %cst_5 = arith.constant 0.000000e+00 : f32
    %6 = vector.broadcast %cst_5 : f32 to vector<8x128xf32>
    %7 = arith.maximumf %5, %6 : vector<8x128xf32>
    %c0_6 = arith.constant 0 : index
    %c0_7 = arith.constant 0 : index
    %8 = vector.load %arg4[%c0_6, %c0_7] : memref<128x128xf32, #tpu.memory_space<vmem>>, vector<128x128xf32>
    %cst_8 = arith.constant dense<0.000000e+00> : vector<8x128xf32>
    %9 = tpu.matmul %7, %8, %cst_8 {dimension_numbers = #tpu.dot_dimension_numbers<[1], [0], [0], [1], [0, 0, 1, 1], [], []>} : vector<8x128xf32>, vector<128x128xf32>, vector<8x128xf32> -> vector<8x128xf32>
    %c0_9 = arith.constant 0 : index
    %c0_10 = arith.constant 0 : index
    %10 = vector.load %arg5[%c0_9, %c0_10] : memref<1x128xf32, #tpu.memory_space<vmem>>, vector<1x128xf32>
    %11 = vector.broadcast %10 : vector<1x128xf32> to vector<8x128xf32>
    %12 = arith.addf %9, %11 : vector<8x128xf32>
    %cst_11 = arith.constant 0.000000e+00 : f32
    %13 = vector.broadcast %cst_11 : f32 to vector<8x128xf32>
    %14 = arith.maximumf %12, %13 : vector<8x128xf32>
    %c0_12 = arith.constant 0 : index
    %c0_13 = arith.constant 0 : index
    %15 = vector.load %arg6[%c0_12, %c0_13] : memref<128x128xf32, #tpu.memory_space<vmem>>, vector<128x128xf32>
    %cst_14 = arith.constant dense<0.000000e+00> : vector<8x128xf32>
    %16 = tpu.matmul %14, %15, %cst_14 {dimension_numbers = #tpu.dot_dimension_numbers<[1], [0], [0], [1], [0, 0, 1, 1], [], []>} : vector<8x128xf32>, vector<128x128xf32>, vector<8x128xf32> -> vector<8x128xf32>
    %c0_15 = arith.constant 0 : index
    %c0_16 = arith.constant 0 : index
    %17 = vector.load %arg7[%c0_15, %c0_16] : memref<1x128xf32, #tpu.memory_space<vmem>>, vector<1x128xf32>
    %18 = vector.broadcast %17 : vector<1x128xf32> to vector<8x128xf32>
    %19 = arith.addf %16, %18 : vector<8x128xf32>
    %cst_17 = arith.constant 0.000000e+00 : f32
    %20 = vector.broadcast %cst_17 : f32 to vector<8x128xf32>
    %21 = arith.maximumf %19, %20 : vector<8x128xf32>
    %c0_18 = arith.constant 0 : index
    %c0_19 = arith.constant 0 : index
    %22 = vector.load %arg8[%c0_18, %c0_19] : memref<128x128xf32, #tpu.memory_space<vmem>>, vector<128x128xf32>
    %cst_20 = arith.constant dense<0.000000e+00> : vector<8x128xf32>
    %23 = tpu.matmul %21, %22, %cst_20 {dimension_numbers = #tpu.dot_dimension_numbers<[1], [0], [0], [1], [0, 0, 1, 1], [], []>} : vector<8x128xf32>, vector<128x128xf32>, vector<8x128xf32> -> vector<8x128xf32>
    %c0_21 = arith.constant 0 : index
    %c0_22 = arith.constant 0 : index
    %24 = vector.load %arg9[%c0_21, %c0_22] : memref<1x128xf32, #tpu.memory_space<vmem>>, vector<1x128xf32>
    %25 = vector.broadcast %24 : vector<1x128xf32> to vector<8x128xf32>
    %26 = arith.addf %23, %25 : vector<8x128xf32>
    %cst_23 = arith.constant 5.000000e-01 : f32
    %27 = vector.broadcast %cst_23 : f32 to vector<8x128xf32>
    %28 = arith.mulf %27, %26 : vector<8x128xf32>
    %29 = math.tanh %28 : vector<8x128xf32>
    %cst_24 = arith.constant 1.000000e+00 : f32
    %30 = vector.broadcast %cst_24 : f32 to vector<8x128xf32>
    %31 = arith.addf %29, %30 : vector<8x128xf32>
    %cst_25 = arith.constant 5.000000e-01 : f32
    %32 = vector.broadcast %cst_25 : f32 to vector<8x128xf32>
    %33 = arith.mulf %32, %31 : vector<8x128xf32>
    %c0_26 = arith.constant 0 : index
    %c0_27 = arith.constant 0 : index
    %34 = vector.load %arg10[%c0_26, %c0_27] : memref<8x128xf32, #tpu.memory_space<vmem>>, vector<8x128xf32>
    tpu.vector_store %arg10[%c0_26, %c0_27], %33 {strides = array<i32>} : memref<8x128xf32, #tpu.memory_space<vmem>>, vector<8x128xf32>,
    return
  }
  func.func @transform_0(%arg0: i32) -> (i32, i32) {
    %c0_i32 = arith.constant 0 : i32
    %c0_i32_0 = arith.constant 0 : i32
    return %arg0, %c0_i32 : i32, i32
  }
  func.func @transform_1(%arg0: i32) -> (i32, i32) {
    %c0_i32 = arith.constant 0 : i32
    %c0_i32_0 = arith.constant 0 : i32
    %c0_i32_1 = arith.constant 0 : i32
    return %c0_i32, %c0_i32_0 : i32, i32
  }
  func.func @transform_2(%arg0: i32) -> (i32, i32) {
    %c0_i32 = arith.constant 0 : i32
    %c0_i32_0 = arith.constant 0 : i32
    %c0_i32_1 = arith.constant 0 : i32
    return %c0_i32, %c0_i32_0 : i32, i32
  }
  func.func @transform_3(%arg0: i32) -> (i32, i32) {
    %c0_i32 = arith.constant 0 : i32
    %c0_i32_0 = arith.constant 0 : i32
    %c0_i32_1 = arith.constant 0 : i32
    return %c0_i32, %c0_i32_0 : i32, i32
  }
  func.func @transform_4(%arg0: i32) -> (i32, i32) {
    %c0_i32 = arith.constant 0 : i32
    %c0_i32_0 = arith.constant 0 : i32
    %c0_i32_1 = arith.constant 0 : i32
    return %c0_i32, %c0_i32_0 : i32, i32
  }
  func.func @transform_5(%arg0: i32) -> (i32, i32) {
    %c0_i32 = arith.constant 0 : i32
    %c0_i32_0 = arith.constant 0 : i32
    %c0_i32_1 = arith.constant 0 : i32
    return %c0_i32, %c0_i32_0 : i32, i32
  }
  func.func @transform_6(%arg0: i32) -> (i32, i32) {
    %c0_i32 = arith.constant 0 : i32
    %c0_i32_0 = arith.constant 0 : i32
    %c0_i32_1 = arith.constant 0 : i32
    return %c0_i32, %c0_i32_0 : i32, i32
  }
  func.func @transform_7(%arg0: i32) -> (i32, i32) {
    %c0_i32 = arith.constant 0 : i32
    %c0_i32_0 = arith.constant 0 : i32
    %c0_i32_1 = arith.constant 0 : i32
    return %c0_i32, %c0_i32_0 : i32, i32
  }
  func.func @transform_8(%arg0: i32) -> (i32, i32) {
    %c0_i32 = arith.constant 0 : i32
    %c0_i32_0 = arith.constant 0 : i32
    %c0_i32_1 = arith.constant 0 : i32
    return %c0_i32, %c0_i32_0 : i32, i32
  }
  func.func @transform_9(%arg0: i32) -> (i32, i32) {
    %c0_i32 = arith.constant 0 : i32
    %c0_i32_0 = arith.constant 0 : i32
    return %arg0, %c0_i32 : i32, i32
  }
}

</mosaic_0001>

<llo_original>
// kernel: label_predictor_forward.1
$region0: #{label_predictor_forward.1}
  #allocation0 [shape = 'u32[]', space=smem, size = 0x4, offset = 0x4, fixed_abs, tag = 'smem constant byte address 0x4 - core index']
  #allocation1 [shape = 'u32[144,128]{1,0:T(1,128)}', space=vmem, size = 0x12000, scoped, tag = 'internal scratch']
  %s0 = inlined_call_operand.vmem [shape: f32[8,128], index: 0, kind: input, shape index: {}]
  %s1 = inlined_call_operand.vmem [shape: f32[128,128], index: 1, kind: input, shape index: {}]
  %s2 = inlined_call_operand.vmem [shape: f32[1,128], index: 2, kind: input, shape index: {}]
  %s3 = inlined_call_operand.vmem [shape: f32[128,128], index: 3, kind: input, shape index: {}]
  %s4 = inlined_call_operand.vmem [shape: f32[1,128], index: 4, kind: input, shape index: {}]
  %s5 = inlined_call_operand.vmem [shape: f32[128,128], index: 5, kind: input, shape index: {}]
  %s6 = inlined_call_operand.vmem [shape: f32[1,128], index: 6, kind: input, shape index: {}]
  %s7 = inlined_call_operand.vmem [shape: f32[128,128], index: 7, kind: input, shape index: {}]
  %s8 = inlined_call_operand.vmem [shape: f32[1,128], index: 8, kind: input, shape index: {}]
  %s9 = inlined_call_operand.hbm [shape: f32[8,128], index: 9, kind: output, shape index: {}]
  %s10 = sld [smem:[#allocation0]]
  $region46: #{label_predictor_forward.1} parent=0
    _
  %s12 = ssub.s32 1, %s10
  %s13 = scalar_select 0, %s12, %s10
  $region1: #{label_predictor_forward.1} parent=0
    #allocation2 [shape = 'u8[4096]{0}', space=vmem, size = 0x1000, scoped, tag = 'output window, operand 0, single buffered']
    #allocation3 [shape = 's32[1]{0}', space=sflag, size = 0x4, scoped, tag = 'scoped memory for label_predictor_forward.1']
    %14 = vsyncpa [#allocation3], 0
    // Predicated region
    $region2: #{label_predictor_forward.1} parent=1 // pred_check
      _
    $region3: #{label_predictor_forward.1} parent=1 // pred_check_branch
      %16 = sbr.rel (0) target = $region5
    $region4: #{label_predictor_forward.1} parent=1 // pred_region
      _
    $region5: #{label_predictor_forward.1} parent=1 // pred_fallthru
      _
    // Predicated region
    $region6: #{label_predictor_forward.1} parent=1 // pred_check
      _
    $region7: #{label_predictor_forward.1} parent=1 // pred_check_branch
      %18 = sbr.rel (0) target = $region9
    $region8: #{label_predictor_forward.1} parent=1 // pred_region
      _
    $region9: #{label_predictor_forward.1} parent=1 // pred_fallthru
      _
    // Predicated region
    $region10: #{label_predictor_forward.1} parent=1 // pred_check
      _
    $region11: #{label_predictor_forward.1} parent=1 // pred_check_branch
      %20 = sbr.rel (0) target = $region13
    $region12: #{label_predictor_forward.1} parent=1 // pred_region
      _
    $region13: #{label_predictor_forward.1} parent=1 // pred_fallthru
      _
    // Predicated region
    $region14: #{label_predictor_forward.1} parent=1 // pred_check
      _
    $region15: #{label_predictor_forward.1} parent=1 // pred_check_branch
      %22 = sbr.rel (0) target = $region17
    $region16: #{label_predictor_forward.1} parent=1 // pred_region
      _
    $region17: #{label_predictor_forward.1} parent=1 // pred_fallthru
      _
    // Predicated region
    $region18: #{label_predictor_forward.1} parent=1 // pred_check
      _
    $region19: #{label_predictor_forward.1} parent=1 // pred_check_branch
      %24 = sbr.rel (0) target = $region21
    $region20: #{label_predictor_forward.1} parent=1 // pred_region
      _
    $region21: #{label_predictor_forward.1} parent=1 // pred_fallthru
      _
    // Predicated region
    $region22: #{label_predictor_forward.1} parent=1 // pred_check
      _
    $region23: #{label_predictor_forward.1} parent=1 // pred_check_branch
      %26 = sbr.rel (0) target = $region25
    $region24: #{label_predictor_forward.1} parent=1 // pred_region
      _
    $region25: #{label_predictor_forward.1} parent=1 // pred_fallthru
      _
    // Predicated region
    $region26: #{label_predictor_forward.1} parent=1 // pred_check
      _
    $region27: #{label_predictor_forward.1} parent=1 // pred_check_branch
      %28 = sbr.rel (0) target = $region29
    $region28: #{label_predictor_forward.1} parent=1 // pred_region
      _
    $region29: #{label_predictor_forward.1} parent=1 // pred_fallthru
      _
    // Predicated region
    $region30: #{label_predictor_forward.1} parent=1 // pred_check
      _
    $region31: #{label_predictor_forward.1} parent=1 // pred_check_branch
      %30 = sbr.rel (0) target = $region33
    $region32: #{label_predictor_forward.1} parent=1 // pred_region
      _
    $region33: #{label_predictor_forward.1} parent=1 // pred_fallthru
      _
    // Predicated region
    $region34: #{label_predictor_forward.1} parent=1 // pred_check
      _
    $region35: #{label_predictor_forward.1} parent=1 // pred_check_branch
      %32 = sbr.rel (0) target = $region37
    $region36: #{label_predictor_forward.1} parent=1 // pred_region
      _
    $region37: #{label_predictor_forward.1} parent=1 // pred_fallthru
      _
    %v33 = vld [vmem:[%s0] sm:$0xff]
    %v34 = vld [vmem:[%s1] sm:$0xff]
    %v35 = vld [vmem:[%s1 + $0x8] sm:$0xff]
    %v36 = vld [vmem:[%s1 + $0x10] sm:$0xff]
    %v37 = vld [vmem:[%s1 + $0x18] sm:$0xff]
    %v38 = vld [vmem:[%s1 + $0x20] sm:$0xff]
    %v39 = vld [vmem:[%s1 + $0x28] sm:$0xff]
    %v40 = vld [vmem:[%s1 + $0x30] sm:$0xff]
    %v41 = vld [vmem:[%s1 + $0x38] sm:$0xff]
    %v42 = vld [vmem:[%s1 + $0x40] sm:$0xff]
    %v43 = vld [vmem:[%s1 + $0x48] sm:$0xff]
    %v44 = vld [vmem:[%s1 + $0x50] sm:$0xff]
    %v45 = vld [vmem:[%s1 + $0x58] sm:$0xff]
    %v46 = vld [vmem:[%s1 + $0x60] sm:$0xff]
    %v47 = vld [vmem:[%s1 + $0x68] sm:$0xff]
    %v48 = vld [vmem:[%s1 + $0x70] sm:$0xff]
    %v49 = vld [vmem:[%s1 + $0x78] sm:$0xff]
    %v50 = vld [vmem:[%s2] sm:$0x1]
    %v52 = vlaneseq
    %v53 = vshrl.u32 %v52, 7
    %v54 = vsub.s32 0, %v53
    %v55 = vrot.slane %v50, %v54
    %57 = vmatprep.subr.mxu0 0.0
    %58 = vmatpush1.msra.mxu0 %v49
    %59 = vmatprep.subr.mxu0 0.0
    %60 = vmatpush1.msra.mxu0 %v48
    %61 = vmatprep.subr.mxu0 0.0
    %62 = vmatpush1.msra.mxu0 %v47
    %63 = vmatprep.subr.mxu0 0.0
    %64 = vmatpush1.msra.mxu0 %v46
    %65 = vmatprep.subr.mxu0 0.0
    %66 = vmatpush1.msra.mxu0 %v45
    %67 = vmatprep.subr.mxu0 0.0
    %68 = vmatpush1.msra.mxu0 %v44
    %69 = vmatprep.subr.mxu0 0.0
    %70 = vmatpush1.msra.mxu0 %v43
    %71 = vmatprep.subr.mxu0 0.0
    %72 = vmatpush1.msra.mxu0 %v42
    %73 = vmatprep.subr.mxu0 0.0
    %74 = vmatpush1.msra.mxu0 %v41
    %75 = vmatprep.subr.mxu0 0.0
    %76 = vmatpush1.msra.mxu0 %v40
    %77 = vmatprep.subr.mxu0 0.0
    %78 = vmatpush1.msra.mxu0 %v39
    %79 = vmatprep.subr.mxu0 0.0
    %80 = vmatpush1.msra.mxu0 %v38
    %81 = vmatprep.subr.mxu0 0.0
    %82 = vmatpush1.msra.mxu0 %v37
    %83 = vmatprep.subr.mxu0 0.0
    %84 = vmatpush1.msra.mxu0 %v36
    %85 = vmatprep.subr.mxu0 0.0
    %86 = vmatpush1.msra.mxu0 %v35
    %87 = vmatprep.subr.mxu0 0.0
    %88 = vmatpush1.msra.mxu0 %v34
    %89 = vmatprep.subr.mxu0 0.0
    %90 = vmatpush2.msra.mxu0 0.0
    %91 = vmatprep.subr.mxu0 0.0
    %92 = vmatpush2.msra.mxu0 0.0
    %93 = vmatprep.subr.mxu0 0.0
    %94 = vmatpush2.msra.mxu0 0.0
    %95 = vmatprep.subr.mxu0 0.0
    %96 = vmatpush2.msra.mxu0 0.0
    %97 = vmatprep.subr.mxu0 0.0
    %98 = vmatpush2.msra.mxu0 0.0
    %99 = vmatprep.subr.mxu0 0.0
    %100 = vmatpush2.msra.mxu0 0.0
    %101 = vmatprep.subr.mxu0 0.0
    %102 = vmatpush2.msra.mxu0 0.0
    %103 = vmatprep.subr.mxu0 0.0
    %104 = vmatpush2.msra.mxu0 0.0
    %105 = vmatprep.subr.mxu0 0.0
    %106 = vmatpush2.msra.mxu0 0.0
    %107 = vmatprep.subr.mxu0 0.0
    %108 = vmatpush2.msra.mxu0 0.0
    %109 = vmatprep.subr.mxu0 0.0
    %110 = vmatpush2.msra.mxu0 0.0
    %111 = vmatprep.subr.mxu0 0.0
    %112 = vmatpush2.msra.mxu0 0.0
    %113 = vmatprep.subr.mxu0 0.0
    %114 = vmatpush2.msra.mxu0 0.0
    %115 = vmatprep.subr.mxu0 0.0
    %116 = vmatpush2.msra.mxu0 0.0
    %117 = vmatprep.subr.mxu0 0.0
    %118 = vmatpush2.msra.mxu0 0.0
    %119 = vmatprep.subr.mxu0 0.0
    %120 = vmatpush2.msra.mxu0 0.0
    %121 = vmatprep.mubr.f32.mxu0 0.0
    %122 = vmatmul.mubr.f32.gmra.mxu0 %v33
    %v123 = vpop.f32.mrf.mxu0
    %v124 = vadd.f32 %v55, %v123
    %v125 = vpop.f32.mrf.mxu0
    %126 = vdwg.mxu0
    %v127 = vmax.f32 %v124, 0.0
    %v128 = vld [vmem:[%s3] sm:$0xff]
    %v129 = vld [vmem:[%s3 + $0x8] sm:$0xff]
    %v130 = vld [vmem:[%s3 + $0x10] sm:$0xff]
    %v131 = vld [vmem:[%s3 + $0x18] sm:$0xff]
    %v132 = vld [vmem:[%s3 + $0x20] sm:$0xff]
    %v133 = vld [vmem:[%s3 + $0x28] sm:$0xff]
    %v134 = vld [vmem:[%s3 + $0x30] sm:$0xff]
    %v135 = vld [vmem:[%s3 + $0x38] sm:$0xff]
    %v136 = vld [vmem:[%s3 + $0x40] sm:$0xff]
    %v137 = vld [vmem:[%s3 + $0x48] sm:$0xff]
    %v138 = vld [vmem:[%s3 + $0x50] sm:$0xff]
    %v139 = vld [vmem:[%s3 + $0x58] sm:$0xff]
    %v140 = vld [vmem:[%s3 + $0x60] sm:$0xff]
    %v141 = vld [vmem:[%s3 + $0x68] sm:$0xff]
    %v142 = vld [vmem:[%s3 + $0x70] sm:$0xff]
    %v143 = vld [vmem:[%s3 + $0x78] sm:$0xff]
    %v144 = vld [vmem:[%s4] sm:$0x1]
    %v146 = vlaneseq
    %v147 = vshrl.u32 %v146, 7
    %v148 = vsub.s32 0, %v147
    %v149 = vrot.slane %v144, %v148
    %151 = vmatprep.subr.mxu0 0.0
    %152 = vmatpush1.msra.mxu0 %v143
    %153 = vmatprep.subr.mxu0 0.0
    %154 = vmatpush1.msra.mxu0 %v142
    %155 = vmatprep.subr.mxu0 0.0
    %156 = vmatpush1.msra.mxu0 %v141
    %157 = vmatprep.subr.mxu0 0.0
    %158 = vmatpush1.msra.mxu0 %v140
    %159 = vmatprep.subr.mxu0 0.0
    %160 = vmatpush1.msra.mxu0 %v139
    %161 = vmatprep.subr.mxu0 0.0
    %162 = vmatpush1.msra.mxu0 %v138
    %163 = vmatprep.subr.mxu0 0.0
    %164 = vmatpush1.msra.mxu0 %v137
    %165 = vmatprep.subr.mxu0 0.0
    %166 = vmatpush1.msra.mxu0 %v136
    %167 = vmatprep.subr.mxu0 0.0
    %168 = vmatpush1.msra.mxu0 %v135
    %169 = vmatprep.subr.mxu0 0.0
    %170 = vmatpush1.msra.mxu0 %v134
    %171 = vmatprep.subr.mxu0 0.0
    %172 = vmatpush1.msra.mxu0 %v133
    %173 = vmatprep.subr.mxu0 0.0
    %174 = vmatpush1.msra.mxu0 %v132
    %175 = vmatprep.subr.mxu0 0.0
    %176 = vmatpush1.msra.mxu0 %v131
    %177 = vmatprep.subr.mxu0 0.0
    %178 = vmatpush1.msra.mxu0 %v130
    %179 = vmatprep.subr.mxu0 0.0
    %180 = vmatpush1.msra.mxu0 %v129
    %181 = vmatprep.subr.mxu0 0.0
    %182 = vmatpush1.msra.mxu0 %v128
    %183 = vmatprep.subr.mxu0 0.0
    %184 = vmatpush2.msra.mxu0 0.0
    %185 = vmatprep.subr.mxu0 0.0
    %186 = vmatpush2.msra.mxu0 0.0
    %187 = vmatprep.subr.mxu0 0.0
    %188 = vmatpush2.msra.mxu0 0.0
    %189 = vmatprep.subr.mxu0 0.0
    %190 = vmatpush2.msra.mxu0 0.0
    %191 = vmatprep.subr.mxu0 0.0
    %192 = vmatpush2.msra.mxu0 0.0
    %193 = vmatprep.subr.mxu0 0.0
    %194 = vmatpush2.msra.mxu0 0.0
    %195 = vmatprep.subr.mxu0 0.0
    %196 = vmatpush2.msra.mxu0 0.0
    %197 = vmatprep.subr.mxu0 0.0
    %198 = vmatpush2.msra.mxu0 0.0
    %199 = vmatprep.subr.mxu0 0.0
    %200 = vmatpush2.msra.mxu0 0.0
    %201 = vmatprep.subr.mxu0 0.0
    %202 = vmatpush2.msra.mxu0 0.0
    %203 = vmatprep.subr.mxu0 0.0
    %204 = vmatpush2.msra.mxu0 0.0
    %205 = vmatprep.subr.mxu0 0.0
    %206 = vmatpush2.msra.mxu0 0.0
    %207 = vmatprep.subr.mxu0 0.0
    %208 = vmatpush2.msra.mxu0 0.0
    %209 = vmatprep.subr.mxu0 0.0
    %210 = vmatpush2.msra.mxu0 0.0
    %211 = vmatprep.subr.mxu0 0.0
    %212 = vmatpush2.msra.mxu0 0.0
    %213 = vmatprep.subr.mxu0 0.0
    %214 = vmatpush2.msra.mxu0 0.0
    %215 = vmatprep.mubr.f32.mxu0 0.0
    %216 = vmatmul.mubr.f32.gmra.mxu0 %v127
    %v217 = vpop.f32.mrf.mxu0
    %v218 = vadd.f32 %v149, %v217
    %v219 = vpop.f32.mrf.mxu0
    %220 = vdwg.mxu0
    %v221 = vmax.f32 %v218, 0.0
    %v222 = vld [vmem:[%s5] sm:$0xff]
    %v223 = vld [vmem:[%s5 + $0x8] sm:$0xff]
    %v224 = vld [vmem:[%s5 + $0x10] sm:$0xff]
    %v225 = vld [vmem:[%s5 + $0x18] sm:$0xff]
    %v226 = vld [vmem:[%s5 + $0x20] sm:$0xff]
    %v227 = vld [vmem:[%s5 + $0x28] sm:$0xff]
    %v228 = vld [vmem:[%s5 + $0x30] sm:$0xff]
    %v229 = vld [vmem:[%s5 + $0x38] sm:$0xff]
    %v230 = vld [vmem:[%s5 + $0x40] sm:$0xff]
    %v231 = vld [vmem:[%s5 + $0x48] sm:$0xff]
    %v232 = vld [vmem:[%s5 + $0x50] sm:$0xff]
    %v233 = vld [vmem:[%s5 + $0x58] sm:$0xff]
    %v234 = vld [vmem:[%s5 + $0x60] sm:$0xff]
    %v235 = vld [vmem:[%s5 + $0x68] sm:$0xff]
    %v236 = vld [vmem:[%s5 + $0x70] sm:$0xff]
    %v237 = vld [vmem:[%s5 + $0x78] sm:$0xff]
    %v238 = vld [vmem:[%s6] sm:$0x1]
    %v240 = vlaneseq
    %v241 = vshrl.u32 %v240, 7
    %v242 = vsub.s32 0, %v241
    %v243 = vrot.slane %v238, %v242
    %245 = vmatprep.subr.mxu0 0.0
    %246 = vmatpush1.msra.mxu0 %v237
    %247 = vmatprep.subr.mxu0 0.0
    %248 = vmatpush1.msra.mxu0 %v236
    %249 = vmatprep.subr.mxu0 0.0
    %250 = vmatpush1.msra.mxu0 %v235
    %251 = vmatprep.subr.mxu0 0.0
    %252 = vmatpush1.msra.mxu0 %v234
    %253 = vmatprep.subr.mxu0 0.0
    %254 = vmatpush1.msra.mxu0 %v233
    %255 = vmatprep.subr.mxu0 0.0
    %256 = vmatpush1.msra.mxu0 %v232
    %257 = vmatprep.subr.mxu0 0.0
    %258 = vmatpush1.msra.mxu0 %v231
    %259 = vmatprep.subr.mxu0 0.0
    %260 = vmatpush1.msra.mxu0 %v230
    %261 = vmatprep.subr.mxu0 0.0
    %262 = vmatpush1.msra.mxu0 %v229
    %263 = vmatprep.subr.mxu0 0.0
    %264 = vmatpush1.msra.mxu0 %v228
    %265 = vmatprep.subr.mxu0 0.0
    %266 = vmatpush1.msra.mxu0 %v227
    %267 = vmatprep.subr.mxu0 0.0
    %268 = vmatpush1.msra.mxu0 %v226
    %269 = vmatprep.subr.mxu0 0.0
    %270 = vmatpush1.msra.mxu0 %v225
    %271 = vmatprep.subr.mxu0 0.0
    %272 = vmatpush1.msra.mxu0 %v224
    %273 = vmatprep.subr.mxu0 0.0
    %274 = vmatpush1.msra.mxu0 %v223
    %275 = vmatprep.subr.mxu0 0.0
    %276 = vmatpush1.msra.mxu0 %v222
    %277 = vmatprep.subr.mxu0 0.0
    %278 = vmatpush2.msra.mxu0 0.0
    %279 = vmatprep.subr.mxu0 0.0
    %280 = vmatpush2.msra.mxu0 0.0
    %281 = vmatprep.subr.mxu0 0.0
    %282 = vmatpush2.msra.mxu0 0.0
    %283 = vmatprep.subr.mxu0 0.0
    %284 = vmatpush2.msra.mxu0 0.0
    %285 = vmatprep.subr.mxu0 0.0
    %286 = vmatpush2.msra.mxu0 0.0
    %287 = vmatprep.subr.mxu0 0.0
    %288 = vmatpush2.msra.mxu0 0.0
    %289 = vmatprep.subr.mxu0 0.0
    %290 = vmatpush2.msra.mxu0 0.0
    %291 = vmatprep.subr.mxu0 0.0
    %292 = vmatpush2.msra.mxu0 0.0
    %293 = vmatprep.subr.mxu0 0.0
    %294 = vmatpush2.msra.mxu0 0.0
    %295 = vmatprep.subr.mxu0 0.0
    %296 = vmatpush2.msra.mxu0 0.0
    %297 = vmatprep.subr.mxu0 0.0
    %298 = vmatpush2.msra.mxu0 0.0
    %299 = vmatprep.subr.mxu0 0.0
    %300 = vmatpush2.msra.mxu0 0.0
    %301 = vmatprep.subr.mxu0 0.0
    %302 = vmatpush2.msra.mxu0 0.0
    %303 = vmatprep.subr.mxu0 0.0
    %304 = vmatpush2.msra.mxu0 0.0
    %305 = vmatprep.subr.mxu0 0.0
    %306 = vmatpush2.msra.mxu0 0.0
    %307 = vmatprep.subr.mxu0 0.0
    %308 = vmatpush2.msra.mxu0 0.0
    %309 = vmatprep.mubr.f32.mxu0 0.0
    %310 = vmatmul.mubr.f32.gmra.mxu0 %v221
    %v311 = vpop.f32.mrf.mxu0
    %v312 = vadd.f32 %v243, %v311
    %v313 = vpop.f32.mrf.mxu0
    %314 = vdwg.mxu0
    %v315 = vmax.f32 %v312, 0.0
    %v316 = vld [vmem:[%s7] sm:$0xff]
    %v317 = vld [vmem:[%s7 + $0x8] sm:$0xff]
    %v318 = vld [vmem:[%s7 + $0x10] sm:$0xff]
    %v319 = vld [vmem:[%s7 + $0x18] sm:$0xff]
    %v320 = vld [vmem:[%s7 + $0x20] sm:$0xff]
    %v321 = vld [vmem:[%s7 + $0x28] sm:$0xff]
    %v322 = vld [vmem:[%s7 + $0x30] sm:$0xff]
    %v323 = vld [vmem:[%s7 + $0x38] sm:$0xff]
    %v324 = vld [vmem:[%s7 + $0x40] sm:$0xff]
    %v325 = vld [vmem:[%s7 + $0x48] sm:$0xff]
    %v326 = vld [vmem:[%s7 + $0x50] sm:$0xff]
    %v327 = vld [vmem:[%s7 + $0x58] sm:$0xff]
    %v328 = vld [vmem:[%s7 + $0x60] sm:$0xff]
    %v329 = vld [vmem:[%s7 + $0x68] sm:$0xff]
    %v330 = vld [vmem:[%s7 + $0x70] sm:$0xff]
    %v331 = vld [vmem:[%s7 + $0x78] sm:$0xff]
    %v332 = vld [vmem:[%s8] sm:$0x1]
    %v334 = vlaneseq
    %v335 = vshrl.u32 %v334, 7
    %v336 = vsub.s32 0, %v335
    %v337 = vrot.slane %v332, %v336
    %339 = vmatprep.subr.mxu0 0.0
    %340 = vmatpush1.msra.mxu0 %v331
    %341 = vmatprep.subr.mxu0 0.0
    %342 = vmatpush1.msra.mxu0 %v330
    %343 = vmatprep.subr.mxu0 0.0
    %344 = vmatpush1.msra.mxu0 %v329
    %345 = vmatprep.subr.mxu0 0.0
    %346 = vmatpush1.msra.mxu0 %v328
    %347 = vmatprep.subr.mxu0 0.0
    %348 = vmatpush1.msra.mxu0 %v327
    %349 = vmatprep.subr.mxu0 0.0
    %350 = vmatpush1.msra.mxu0 %v326
    %351 = vmatprep.subr.mxu0 0.0
    %352 = vmatpush1.msra.mxu0 %v325
    %353 = vmatprep.subr.mxu0 0.0
    %354 = vmatpush1.msra.mxu0 %v324
    %355 = vmatprep.subr.mxu0 0.0
    %356 = vmatpush1.msra.mxu0 %v323
    %357 = vmatprep.subr.mxu0 0.0
    %358 = vmatpush1.msra.mxu0 %v322
    %359 = vmatprep.subr.mxu0 0.0
    %360 = vmatpush1.msra.mxu0 %v321
    %361 = vmatprep.subr.mxu0 0.0
    %362 = vmatpush1.msra.mxu0 %v320
    %363 = vmatprep.subr.mxu0 0.0
    %364 = vmatpush1.msra.mxu0 %v319
    %365 = vmatprep.subr.mxu0 0.0
    %366 = vmatpush1.msra.mxu0 %v318
    %367 = vmatprep.subr.mxu0 0.0
    %368 = vmatpush1.msra.mxu0 %v317
    %369 = vmatprep.subr.mxu0 0.0
    %370 = vmatpush1.msra.mxu0 %v316
    %371 = vmatprep.subr.mxu0 0.0
    %372 = vmatpush2.msra.mxu0 0.0
    %373 = vmatprep.subr.mxu0 0.0
    %374 = vmatpush2.msra.mxu0 0.0
    %375 = vmatprep.subr.mxu0 0.0
    %376 = vmatpush2.msra.mxu0 0.0
    %377 = vmatprep.subr.mxu0 0.0
    %378 = vmatpush2.msra.mxu0 0.0
    %379 = vmatprep.subr.mxu0 0.0
    %380 = vmatpush2.msra.mxu0 0.0
    %381 = vmatprep.subr.mxu0 0.0
    %382 = vmatpush2.msra.mxu0 0.0
    %383 = vmatprep.subr.mxu0 0.0
    %384 = vmatpush2.msra.mxu0 0.0
    %385 = vmatprep.subr.mxu0 0.0
    %386 = vmatpush2.msra.mxu0 0.0
    %387 = vmatprep.subr.mxu0 0.0
    %388 = vmatpush2.msra.mxu0 0.0
    %389 = vmatprep.subr.mxu0 0.0
    %390 = vmatpush2.msra.mxu0 0.0
    %391 = vmatprep.subr.mxu0 0.0
    %392 = vmatpush2.msra.mxu0 0.0
    %393 = vmatprep.subr.mxu0 0.0
    %394 = vmatpush2.msra.mxu0 0.0
    %395 = vmatprep.subr.mxu0 0.0
    %396 = vmatpush2.msra.mxu0 0.0
    %397 = vmatprep.subr.mxu0 0.0
    %398 = vmatpush2.msra.mxu0 0.0
    %399 = vmatprep.subr.mxu0 0.0
    %400 = vmatpush2.msra.mxu0 0.0
    %401 = vmatprep.subr.mxu0 0.0
    %402 = vmatpush2.msra.mxu0 0.0
    %403 = vmatprep.mubr.f32.mxu0 0.0
    %404 = vmatmul.mubr.f32.gmra.mxu0 %v315
    %v405 = vpop.f32.mrf.mxu0
    %v406 = vadd.f32 %v337, %v405
    %v407 = vpop.f32.mrf.mxu0
    %408 = vdwg.mxu0
    %v409 = vmul.f32 %v406, 0.5
    %v410 = vtanh.pop %v409
    %v411 = vadd.f32 %v410, 1.0
    %v412 = vmul.f32 %v411, 0.5
    %413 = vst [vmem:[#allocation2] sm:$0xff] %v412
    // Predicated region
    $region38: #{label_predictor_forward.1} parent=1 // pred_check
      _
    $region39: #{label_predictor_forward.1} parent=1 // pred_check_branch
      %415 = sbr.rel (0) target = $region41
    $region40: #{label_predictor_forward.1} parent=1 // pred_region
      %s417 = ssub.s32 128, 128
      %418 = vsyncadd [#allocation3], %s417
      %s420 = sshll.u32 [#allocation2], 4
      %s421 = int_to_ptr.vmem [resolvable:$true] %s420
      %423 = dma.vmem_to_hbm [thread:$0]  %s421, 128, %s9, [#allocation3]
    $region41: #{label_predictor_forward.1} parent=1 // pred_fallthru
      _
    // Predicated region
    $region42: #{label_predictor_forward.1} parent=1 // pred_check
      _
    $region43: #{label_predictor_forward.1} parent=1 // pred_check_branch
      %425 = sbr.rel (0) target = $region45
    $region44: #{label_predictor_forward.1} parent=1 // pred_region
      %426 = dma.done [#allocation3], 128
    $region45: #{label_predictor_forward.1} parent=1 // pred_fallthru
      _
    %427 = vsyncpa [#allocation3], 1

</llo_original>
